<compile_context>
chip_gen: v6e
topology: v6e:2x2x1
jax: 0.10.0
libtpu: 0.0.40
codegen_flags: <defaults>
</compile_context>

<pallas_src>
import math

import jax
import jax.numpy as jnp
import numpy as np
from jax.experimental import pallas as pl
from jax.experimental.pallas import tpu as pltpu

_LANE = 128  # TPU lane width; use 256-multiples for hidden dims when compute-bound on v6e/v7x.


def _make_mlp_kernel(num_layers, compute_dtype):
    """Kernel for a fixed layer count; args = (x, w1, b1, ..., wL, bL, out)."""

    def kernel(x_ref, *args):
        o_ref = args[-1]
        wb = args[:-1]

        h = x_ref[...]                                        # (bm, d_in_p), compute_dtype
        for i in range(num_layers):
            w = wb[2 * i][...]                                # (d_prev_p, d_next_p), compute_dtype
            b = wb[2 * i + 1][...]                            # (1, d_next_p), f32
            acc = jnp.dot(h, w, preferred_element_type=jnp.float32) + b
            if i < num_layers - 1:                            # ReLU on all but last layer
                h = jnp.maximum(acc, 0.0).astype(compute_dtype)
            else:
                h = acc
        # Single write-once store of the whole output tile.
        o_ref[...] = h.astype(o_ref.dtype)

    return kernel


def _choose_bm(M, target_bm):
    """Row-tile size: multiple of 8, >=2 tiles when M > 8, divisor of M if possible."""
    target = max(8, (int(target_bm) // 8) * 8)                # defensive 8-alignment
    if M <= 8:
        return 8
    # Cap at ~M/2 (rounded to 8) so the grid always has >= 2 tiles (v7x megacore).
    cap = max(8, min(target, pl.cdiv(M, 2 * 8) * 8))
    # Prefer a bm that divides M exactly -> no wrapper-side pad / slice copies.
    if M % 8 == 0:
        for bm in range(cap, 7, -8):
            if M % bm == 0:
                return bm
    return cap


def mlp_forward(x, params, *, block_m=512, compute_dtype=jnp.bfloat16):
    """x: (..., input_dim); params: list of (W(out,in), b(out,)) per nn.Linear.

    Returns (..., output_dim), matching MLP.forward.
    """
    orig_lead = x.shape[:-1]
    d_in = int(x.shape[-1])
    num_layers = len(params)
    dims = [d_in] + [int(w.shape[0]) for (w, _) in params]
    d_out = dims[-1]
    out_dtype = x.dtype

    M = int(np.prod(orig_lead)) if orig_lead else 1
    bm = _choose_bm(M, block_m)
    M_pad = pl.cdiv(M, bm) * bm

    # Pad input/hidden feature dims to lane width (exact with zero-padded
    # weights); leave d_out unpadded (full-dim last block is legal).
    p_dims = [pl.cdiv(d, _LANE) * _LANE for d in dims[:-1]] + [d_out]

    c_itemsize = np.dtype(compute_dtype).itemsize
    o_itemsize = np.dtype(out_dtype).itemsize

    # Cast the dominant activation stream in the wrapper so the DMA itself
    # moves half the bytes (bf16); single combined pad (often a no-op).
    x2 = x.reshape(M, d_in).astype(compute_dtype)
    if M_pad != M or p_dims[0] != d_in:
        x2 = jnp.pad(x2, ((0, M_pad - M), (0, p_dims[0] - d_in)))

    # nn.Linear stores W as (out, in); pre-transpose + pad ONCE in the wrapper
    # so the kernel runs plain row-major h @ W on the MXU.
    flat_wb = []
    in_specs = [pl.BlockSpec((bm, p_dims[0]), lambda i: (i, 0))]
    for li, (w, b) in enumerate(params):
        wt = jnp.asarray(w).T.astype(compute_dtype)           # (d_prev, d_next)
        bb = jnp.asarray(b, jnp.float32).reshape(1, -1)        # (1, d_next), f32 bias
        rp, cp = p_dims[li] - dims[li], p_dims[li + 1] - dims[li + 1]
        if rp or cp:
            wt = jnp.pad(wt, ((0, rp), (0, cp)))
        if cp:
            bb = jnp.pad(bb, ((0, 0), (0, cp)))
        flat_wb += [wt, bb]
        in_specs += [
            pl.BlockSpec((p_dims[li], p_dims[li + 1]), lambda i: (0, 0)),
            pl.BlockSpec((1, p_dims[li + 1]), lambda i: (0, 0)),
        ]

    # Per-step VMEM footprint (double-buffered blocks + live f32 intermediates);
    # keep the explicit limit well under v7x's 64 MiB physical VMEM.
    vmem_bytes = 2 * bm * p_dims[0] * c_itemsize + 2 * bm * d_out * o_itemsize
    for li in range(num_layers):
        vmem_bytes += 2 * (p_dims[li] * p_dims[li + 1] * c_itemsize + p_dims[li + 1] * 4)
    vmem_bytes += 4 * bm * max(p_dims) * 4
    vmem_limit = int(min(56 * 2**20, max(2 * vmem_bytes, 16 * 2**20)))

    flops = 2 * M * sum(dims[i] * dims[i + 1] for i in range(num_layers))
    bytes_accessed = (x2.size * c_itemsize
                      + sum(a.size * np.dtype(a.dtype).itemsize for a in flat_wb)
                      + M_pad * d_out * o_itemsize)
    cost = pl.CostEstimate(flops=int(flops), transcendentals=0,
                           bytes_accessed=int(bytes_accessed))

    out = pl.pallas_call(
        _make_mlp_kernel(num_layers, compute_dtype),
        out_shape=jax.ShapeDtypeStruct((M_pad, d_out), out_dtype),
        grid_spec=pltpu.PrefetchScalarGridSpec(
            num_scalar_prefetch=0,
            grid=(M_pad // bm,),
            in_specs=in_specs,
            out_specs=pl.BlockSpec((bm, d_out), lambda i: (i, 0)),
        ),
        compiler_params=pltpu.CompilerParams(
            # Row tiles are independent -> megacore shards them on v7x.
            dimension_semantics=("parallel",),
            vmem_limit_bytes=vmem_limit,
        ),
        cost_estimate=cost,
    )(x2, *flat_wb)

    if M_pad != M:
        out = out[:M]
    return out.reshape(*orig_lead, d_out) if orig_lead else out.reshape(d_out)


def mlp_ref(x, params):
    """Pure-JAX reference mirroring the PyTorch MLP.forward."""
    h = x
    n = len(params)
    for i, (w, b) in enumerate(params):
        h = h @ w.T + b
        if i < n - 1:
            h = jax.nn.relu(h)
    return h


if __name__ == "__main__":
    # Small shapes consistent with the DETR-style box/query MLP.
    B, S = 2, 8
    input_dim, hidden_dim, output_dim, num_layers = 32, 32, 4, 3

    key = jax.random.PRNGKey(0)
    keys = jax.random.split(key, 1 + 2 * num_layers)

    x = jax.random.normal(keys[0], (B, S, input_dim), jnp.float32)

    dims = [input_dim] + [hidden_dim] * (num_layers - 1) + [output_dim]
    params = []
    for i in range(num_layers):
        n_in, n_out = dims[i], dims[i + 1]
        bound = 1.0 / math.sqrt(n_in)
        w = jax.random.uniform(keys[1 + 2 * i], (n_out, n_in), jnp.float32,
                               -bound, bound)
        b = jax.random.uniform(keys[2 + 2 * i], (n_out,), jnp.float32,
                               -bound, bound)
        params.append((w, b))

    ref = mlp_ref(x, params)

    # Exactness check: f32 compute path matches the PyTorch semantics at 1e-5.
    # M=16 rows -> bm=8, 2 grid tiles (both v7x TCs busy), no M pad/slice.
    out_f32 = jax.block_until_ready(mlp_forward(x, params, compute_dtype=jnp.float32))
    np.testing.assert_allclose(np.asarray(out_f32), np.asarray(ref),
                               rtol=1e-5, atol=1e-5)

    # Production path: bf16 operands on the MXU with f32 accumulation (half the
    # HBM bytes); tolerance relaxed to bf16 mantissa precision.
    out_bf16 = jax.block_until_ready(mlp_forward(x, params))
    np.testing.assert_allclose(np.asarray(out_bf16), np.asarray(ref),
                               rtol=2e-2, atol=2e-2)

    print("KERNEL_OK")
</pallas_src>

<mosaic_0001>
module attributes {stable_mosaic.version = 11 : i64} {
  func.func @kernel(%arg0: i32, %arg1: memref<8x128xf32, #tpu.memory_space<vmem>>, %arg2: memref<128x128xf32, #tpu.memory_space<vmem>>, %arg3: memref<1x128xf32, #tpu.memory_space<vmem>>, %arg4: memref<128x128xf32, #tpu.memory_space<vmem>>, %arg5: memref<1x128xf32, #tpu.memory_space<vmem>>, %arg6: memref<128x4xf32, #tpu.memory_space<vmem>>, %arg7: memref<1x4xf32, #tpu.memory_space<vmem>>, %arg8: memref<8x4xf32, #tpu.memory_space<vmem>>) attributes {dimension_semantics = [#tpu.dimension_semantics<parallel>], iteration_bounds = array<i64: 2>, scalar_prefetch = 0 : i64, scratch_operands = 0 : i64, tpu.core_type = #tpu.core_type<tc>, window_params = [{transform_indices = @transform_0, window_bounds = array<i64: 8, 128>}, {pipeline_mode = #tpu.pipeline_mode<synchronous>, transform_indices = @transform_1, window_bounds = array<i64: 128, 128>}, {pipeline_mode = #tpu.pipeline_mode<synchronous>, transform_indices = @transform_2, window_bounds = array<i64: 1, 128>}, {pipeline_mode = #tpu.pipeline_mode<synchronous>, transform_indices = @transform_3, window_bounds = array<i64: 128, 128>}, {pipeline_mode = #tpu.pipeline_mode<synchronous>, transform_indices = @transform_4, window_bounds = array<i64: 1, 128>}, {pipeline_mode = #tpu.pipeline_mode<synchronous>, transform_indices = @transform_5, window_bounds = array<i64: 128, 4>}, {pipeline_mode = #tpu.pipeline_mode<synchronous>, transform_indices = @transform_6, window_bounds = array<i64: 1, 4>}, {transform_indices = @transform_7, window_bounds = array<i64: 8, 4>}]} {
    %c0 = arith.constant 0 : index
    %c0_0 = arith.constant 0 : index
    %0 = vector.load %arg1[%c0, %c0_0] : memref<8x128xf32, #tpu.memory_space<vmem>>, vector<8x128xf32>
    %c0_1 = arith.constant 0 : index
    %c0_2 = arith.constant 0 : index
    %1 = vector.load %arg2[%c0_1, %c0_2] : memref<128x128xf32, #tpu.memory_space<vmem>>, vector<128x128xf32>
    %c0_3 = arith.constant 0 : index
    %c0_4 = arith.constant 0 : index
    %2 = vector.load %arg3[%c0_3, %c0_4] : memref<1x128xf32, #tpu.memory_space<vmem>>, vector<1x128xf32>
    %cst = arith.constant dense<0.000000e+00> : vector<8x128xf32>
    %3 = tpu.matmul %0, %1, %cst {dimension_numbers = #tpu.dot_dimension_numbers<[1], [0], [0], [1], [0, 0, 1, 1], [], []>} : vector<8x128xf32>, vector<128x128xf32>, vector<8x128xf32> -> vector<8x128xf32>
    %4 = vector.broadcast %2 : vector<1x128xf32> to vector<8x128xf32>
    %5 = arith.addf %3, %4 : vector<8x128xf32>
    %cst_5 = arith.constant 0.000000e+00 : f32
    %6 = vector.broadcast %cst_5 : f32 to vector<8x128xf32>
    %7 = arith.maximumf %5, %6 : vector<8x128xf32>
    %c0_6 = arith.constant 0 : index
    %c0_7 = arith.constant 0 : index
    %8 = vector.load %arg4[%c0_6, %c0_7] : memref<128x128xf32, #tpu.memory_space<vmem>>, vector<128x128xf32>
    %c0_8 = arith.constant 0 : index
    %c0_9 = arith.constant 0 : index
    %9 = vector.load %arg5[%c0_8, %c0_9] : memref<1x128xf32, #tpu.memory_space<vmem>>, vector<1x128xf32>
    %cst_10 = arith.constant dense<0.000000e+00> : vector<8x128xf32>
    %10 = tpu.matmul %7, %8, %cst_10 {dimension_numbers = #tpu.dot_dimension_numbers<[1], [0], [0], [1], [0, 0, 1, 1], [], []>} : vector<8x128xf32>, vector<128x128xf32>, vector<8x128xf32> -> vector<8x128xf32>
    %11 = vector.broadcast %9 : vector<1x128xf32> to vector<8x128xf32>
    %12 = arith.addf %10, %11 : vector<8x128xf32>
    %cst_11 = arith.constant 0.000000e+00 : f32
    %13 = vector.broadcast %cst_11 : f32 to vector<8x128xf32>
    %14 = arith.maximumf %12, %13 : vector<8x128xf32>
    %c0_12 = arith.constant 0 : index
    %c0_13 = arith.constant 0 : index
    %15 = vector.load %arg6[%c0_12, %c0_13] : memref<128x4xf32, #tpu.memory_space<vmem>>, vector<128x4xf32>
    %c0_14 = arith.constant 0 : index
    %c0_15 = arith.constant 0 : index
    %16 = vector.load %arg7[%c0_14, %c0_15] : memref<1x4xf32, #tpu.memory_space<vmem>>, vector<1x4xf32>
    %cst_16 = arith.constant dense<0.000000e+00> : vector<8x4xf32>
    %17 = tpu.matmul %14, %15, %cst_16 {dimension_numbers = #tpu.dot_dimension_numbers<[1], [0], [0], [1], [0, 0, 1, 1], [], []>} : vector<8x128xf32>, vector<128x4xf32>, vector<8x4xf32> -> vector<8x4xf32>
    %18 = vector.broadcast %16 : vector<1x4xf32> to vector<8x4xf32>
    %19 = arith.addf %17, %18 : vector<8x4xf32>
    %c0_17 = arith.constant 0 : index
    %c0_18 = arith.constant 0 : index
    %20 = vector.load %arg8[%c0_17, %c0_18] : memref<8x4xf32, #tpu.memory_space<vmem>>, vector<8x4xf32>
    tpu.vector_store %arg8[%c0_17, %c0_18], %19 {strides = array<i32>} : memref<8x4xf32, #tpu.memory_space<vmem>>, vector<8x4xf32>,
    return
  }
  func.func @transform_0(%arg0: i32) -> (i32, i32) {
    %c0_i32 = arith.constant 0 : i32
    %c0_i32_0 = arith.constant 0 : i32
    return %arg0, %c0_i32 : i32, i32
  }
  func.func @transform_1(%arg0: i32) -> (i32, i32) {
    %c0_i32 = arith.constant 0 : i32
    %c0_i32_0 = arith.constant 0 : i32
    %c0_i32_1 = arith.constant 0 : i32
    return %c0_i32, %c0_i32_0 : i32, i32
  }
  func.func @transform_2(%arg0: i32) -> (i32, i32) {
    %c0_i32 = arith.constant 0 : i32
    %c0_i32_0 = arith.constant 0 : i32
    %c0_i32_1 = arith.constant 0 : i32
    return %c0_i32, %c0_i32_0 : i32, i32
  }
  func.func @transform_3(%arg0: i32) -> (i32, i32) {
    %c0_i32 = arith.constant 0 : i32
    %c0_i32_0 = arith.constant 0 : i32
    %c0_i32_1 = arith.constant 0 : i32
    return %c0_i32, %c0_i32_0 : i32, i32
  }
  func.func @transform_4(%arg0: i32) -> (i32, i32) {
    %c0_i32 = arith.constant 0 : i32
    %c0_i32_0 = arith.constant 0 : i32
    %c0_i32_1 = arith.constant 0 : i32
    return %c0_i32, %c0_i32_0 : i32, i32
  }
  func.func @transform_5(%arg0: i32) -> (i32, i32) {
    %c0_i32 = arith.constant 0 : i32
    %c0_i32_0 = arith.constant 0 : i32
    %c0_i32_1 = arith.constant 0 : i32
    return %c0_i32, %c0_i32_0 : i32, i32
  }
  func.func @transform_6(%arg0: i32) -> (i32, i32) {
    %c0_i32 = arith.constant 0 : i32
    %c0_i32_0 = arith.constant 0 : i32
    %c0_i32_1 = arith.constant 0 : i32
    return %c0_i32, %c0_i32_0 : i32, i32
  }
  func.func @transform_7(%arg0: i32) -> (i32, i32) {
    %c0_i32 = arith.constant 0 : i32
    %c0_i32_0 = arith.constant 0 : i32
    return %arg0, %c0_i32 : i32, i32
  }
}

</mosaic_0001>

<llo_original>
// kernel: tpu_custom_call.1
$region0: #{tpu_custom_call.1}
  #allocation0 [shape = 'u32[]', space=smem, size = 0x4, offset = 0x4, fixed_abs, tag = 'smem constant byte address 0x4 - core index']
  #allocation1 [shape = 'u32[144,128]{1,0:T(1,128)}', space=vmem, size = 0x12000, scoped, tag = 'internal scratch']
  %s0 = inlined_call_operand.hbm [shape: f32[16,128], index: 0, kind: input, shape index: {}]
  %s1 = inlined_call_operand.vmem [shape: f32[128,128], index: 1, kind: input, shape index: {}]
  %s2 = inlined_call_operand.vmem [shape: f32[1,128], index: 2, kind: input, shape index: {}]
  %s3 = inlined_call_operand.hbm [shape: f32[128,128], index: 3, kind: input, shape index: {}]
  %s4 = inlined_call_operand.vmem [shape: f32[1,128], index: 4, kind: input, shape index: {}]
  %s5 = inlined_call_operand.vmem [shape: f32[128,4], index: 5, kind: input, shape index: {}]
  %s6 = inlined_call_operand.vmem [shape: f32[1,4], index: 6, kind: input, shape index: {}]
  %s7 = inlined_call_operand.vmem [shape: f32[16,4], index: 7, kind: output, shape index: {}]
  %s8 = sld [smem:[#allocation0]]
  $region69: #{tpu_custom_call.1} parent=0
    _
  %s10 = ssub.s32 1, %s8
  %s11 = scalar_select 0, %s10, %s8
  $region1: #{tpu_custom_call.1} parent=0
    #allocation2 [shape = 'u8[8192]{0}', space=vmem, size = 0x2000, scoped, tag = 'input window, operand 0']
    #allocation3 [shape = 's32[2]{0}', space=sflag, size = 0x8, scoped, tag = 'scoped memory for tpu_custom_call.1']
    #allocation4 [shape = 'u8[65536]{0}', space=vmem, size = 0x10000, scoped, tag = 'input window, operand 3, single buffered']
    #allocation5 [shape = 's32[1]{0}', space=sflag, size = 0x4, scoped, tag = 'scoped memory for tpu_custom_call.1']
    %12 = vsyncpa [#allocation3], 0
    %s13 = scalar_lea.sflag [#allocation3], 1
    %14 = vsyncpa %s13, 0
    %15 = vsyncpa [#allocation5], 0
    loop: start=0, step=1, limit=4
    $region2: #{tpu_custom_call.1} parent=1 // loop_pre_header
      _
    $region3: #{tpu_custom_call.1} parent=1 // loop_header
      %s17 = sphi 0, %s21
      %p18 = scmp.ge.s32.totalorder %s17, 4
      %s27 = sphi 0, %s29
      %s30 = sphi 0, %s27
      %s31 = sphi 0, %s30
      %s47 = sphi 0, %s31
      %s51 = sphi 0, %s51
      %s53 = sphi 0, %s51
      %s54 = sphi 0, %s53
      %s68 = sphi 0, %s54
      %s72 = sphi 0, %s72
      %s74 = sphi 0, %s72
      %s75 = sphi 0, %s74
      %s89 = sphi 0, %s75
      %s93 = sphi 0, %s93
      %s95 = sphi 0, %s93
      %s96 = sphi 0, %s95
      %s110 = sphi 0, %s96
      %s114 = sphi 0, %s114
      %s116 = sphi 0, %s114
      %s117 = sphi 0, %s116
      %s131 = sphi 0, %s117
      %s135 = sphi 0, %s135
      %s137 = sphi 0, %s135
      %s138 = sphi 0, %s137
      %s152 = sphi 0, %s138
      %s156 = sphi 0, %s156
      %s158 = sphi 0, %s156
      %s159 = sphi 0, %s158
      %s173 = sphi 0, %s159
      %s179 = sphi 0, %s181
      %s182 = sphi 0, %s179
      %s183 = sphi 0, %s182
      %s199 = sphi 0, %s183
    $region4: #{tpu_custom_call.1} parent=1 // loop_header_branch
      %20 = sbr.rel (%p18) target = $region8
    $region5: #{tpu_custom_call.1} parent=1 // loop_body
      %s22 = ssub.s32 %s17, 1
      %s23 = ssub.s32 %s17, 2
      %s24 = sadd.s32 %s17, 1
      %s25 = ssub.s32 %s17, %s24
      %p26 = scmp.eq.s32.totalorder %s25, 0
      %s28 = sadd.s32 %s27, 1
      %s29 = scalar_select %p26, %s27, %s28
      %p32 = pneg %p26
      %p33 = scmp.eq.s32.totalorder %s17, 1
      %p34 = por %p32, %p33
      %p35 = scmp.ne.s32.totalorder %s27, %s30
      %p36 = scmp.eq.s32.totalorder %s17, 0
      %p37 = por %p35, %p36
      %p38 = scmp.ne.s32.totalorder %s27, %s30
      %p39 = scmp.eq.s32.totalorder %s22, 1
      %p40 = por %p38, %p39
      %p41 = scmp.ne.s32.totalorder %s30, %s31
      %p42 = scmp.eq.s32.totalorder %s22, 0
      %p43 = por %p41, %p42
      %p44 = scmp.ne.s32.totalorder %s30, %s31
      %p45 = scmp.eq.s32.totalorder %s23, 1
      %p46 = por %p44, %p45
      %p48 = scmp.ne.s32.totalorder %s31, %s47
      %p49 = scmp.eq.s32.totalorder %s23, 0
      %p50 = por %p48, %p49
      %s52 = sadd.s32 %s51, 1
      %p55 = scmp.eq.s32.totalorder %s17, 1
      %p56 = scmp.ne.s32.totalorder %s51, %s53
      %p57 = scmp.eq.s32.totalorder %s17, 0
      %p58 = por %p56, %p57
      %p59 = scmp.ne.s32.totalorder %s51, %s53
      %p60 = scmp.eq.s32.totalorder %s22, 1
      %p61 = por %p59, %p60
      %p62 = scmp.ne.s32.totalorder %s53, %s54
      %p63 = scmp.eq.s32.totalorder %s22, 0
      %p64 = por %p62, %p63
      %p65 = scmp.ne.s32.totalorder %s53, %s54
      %p66 = scmp.eq.s32.totalorder %s23, 1
      %p67 = por %p65, %p66
      %p69 = scmp.ne.s32.totalorder %s54, %s68
      %p70 = scmp.eq.s32.totalorder %s23, 0
      %p71 = por %p69, %p70
      %s73 = sadd.s32 %s72, 1
      %p76 = scmp.eq.s32.totalorder %s17, 1
      %p77 = scmp.ne.s32.totalorder %s72, %s74
      %p78 = scmp.eq.s32.totalorder %s17, 0
      %p79 = por %p77, %p78
      %p80 = scmp.ne.s32.totalorder %s72, %s74
      %p81 = scmp.eq.s32.totalorder %s22, 1
      %p82 = por %p80, %p81
      %p83 = scmp.ne.s32.totalorder %s74, %s75
      %p84 = scmp.eq.s32.totalorder %s22, 0
      %p85 = por %p83, %p84
      %p86 = scmp.ne.s32.totalorder %s74, %s75
      %p87 = scmp.eq.s32.totalorder %s23, 1
      %p88 = por %p86, %p87
      %p90 = scmp.ne.s32.totalorder %s75, %s89
      %p91 = scmp.eq.s32.totalorder %s23, 0
      %p92 = por %p90, %p91
      %s94 = sadd.s32 %s93, 1
      %p97 = scmp.eq.s32.totalorder %s17, 1
      %p98 = scmp.ne.s32.totalorder %s93, %s95
      %p99 = scmp.eq.s32.totalorder %s17, 0
      %p100 = por %p98, %p99
      %p101 = scmp.ne.s32.totalorder %s93, %s95
      %p102 = scmp.eq.s32.totalorder %s22, 1
      %p103 = por %p101, %p102
      %p104 = scmp.ne.s32.totalorder %s95, %s96
      %p105 = scmp.eq.s32.totalorder %s22, 0
      %p106 = por %p104, %p105
      %p107 = scmp.ne.s32.totalorder %s95, %s96
      %p108 = scmp.eq.s32.totalorder %s23, 1
      %p109 = por %p107, %p108
      %p111 = scmp.ne.s32.totalorder %s96, %s110
      %p112 = scmp.eq.s32.totalorder %s23, 0
      %p113 = por %p111, %p112
      %s115 = sadd.s32 %s114, 1
      %p118 = scmp.eq.s32.totalorder %s17, 1
      %p119 = scmp.ne.s32.totalorder %s114, %s116
      %p120 = scmp.eq.s32.totalorder %s17, 0
      %p121 = por %p119, %p120
      %p122 = scmp.ne.s32.totalorder %s114, %s116
      %p123 = scmp.eq.s32.totalorder %s22, 1
      %p124 = por %p122, %p123
      %p125 = scmp.ne.s32.totalorder %s116, %s117
      %p126 = scmp.eq.s32.totalorder %s22, 0
      %p127 = por %p125, %p126
      %p128 = scmp.ne.s32.totalorder %s116, %s117
      %p129 = scmp.eq.s32.totalorder %s23, 1
      %p130 = por %p128, %p129
      %p132 = scmp.ne.s32.totalorder %s117, %s131
      %p133 = scmp.eq.s32.totalorder %s23, 0
      %p134 = por %p132, %p133
      %s136 = sadd.s32 %s135, 1
      %p139 = scmp.eq.s32.totalorder %s17, 1
      %p140 = scmp.ne.s32.totalorder %s135, %s137
      %p141 = scmp.eq.s32.totalorder %s17, 0
      %p142 = por %p140, %p141
      %p143 = scmp.ne.s32.totalorder %s135, %s137
      %p144 = scmp.eq.s32.totalorder %s22, 1
      %p145 = por %p143, %p144
      %p146 = scmp.ne.s32.totalorder %s137, %s138
      %p147 = scmp.eq.s32.totalorder %s22, 0
      %p148 = por %p146, %p147
      %p149 = scmp.ne.s32.totalorder %s137, %s138
      %p150 = scmp.eq.s32.totalorder %s23, 1
      %p151 = por %p149, %p150
      %p153 = scmp.ne.s32.totalorder %s138, %s152
      %p154 = scmp.eq.s32.totalorder %s23, 0
      %p155 = por %p153, %p154
      %s157 = sadd.s32 %s156, 1
      %p160 = scmp.eq.s32.totalorder %s17, 1
      %p161 = scmp.ne.s32.totalorder %s156, %s158
      %p162 = scmp.eq.s32.totalorder %s17, 0
      %p163 = por %p161, %p162
      %p164 = scmp.ne.s32.totalorder %s156, %s158
      %p165 = scmp.eq.s32.totalorder %s22, 1
      %p166 = por %p164, %p165
      %p167 = scmp.ne.s32.totalorder %s158, %s159
      %p168 = scmp.eq.s32.totalorder %s22, 0
      %p169 = por %p167, %p168
      %p170 = scmp.ne.s32.totalorder %s158, %s159
      %p171 = scmp.eq.s32.totalorder %s23, 1
      %p172 = por %p170, %p171
      %p174 = scmp.ne.s32.totalorder %s159, %s173
      %p175 = scmp.eq.s32.totalorder %s23, 0
      %p176 = por %p174, %p175
      %s177 = ssub.s32 %s17, %s24
      %p178 = scmp.eq.s32.totalorder %s177, 0
      %s180 = sadd.s32 %s179, 1
      %s181 = scalar_select %p178, %s179, %s180
      %p184 = pneg %p178
      %p185 = scmp.eq.s32.totalorder %s17, 1
      %p186 = por %p184, %p185
      %p187 = scmp.ne.s32.totalorder %s179, %s182
      %p188 = scmp.eq.s32.totalorder %s17, 0
      %p189 = por %p187, %p188
      %p190 = scmp.ne.s32.totalorder %s179, %s182
      %p191 = scmp.eq.s32.totalorder %s22, 1
      %p192 = por %p190, %p191
      %p193 = scmp.ne.s32.totalorder %s182, %s183
      %p194 = scmp.eq.s32.totalorder %s22, 0
      %p195 = por %p193, %p194
      %p196 = scmp.ne.s32.totalorder %s182, %s183
      %p197 = scmp.eq.s32.totalorder %s23, 1
      %p198 = por %p196, %p197
      %p200 = scmp.ne.s32.totalorder %s183, %s199
      %p201 = scmp.eq.s32.totalorder %s23, 0
      %p202 = por %p200, %p201
      %p203 = scmp.le.s32.totalorder 1, %s17
      %p204 = scmp.lt.s32.totalorder %s17, 3
      %p205 = pnand %p203, %p204
      %p206 = pneg %p205
      // Predicated region
      $region9: #{tpu_custom_call.1} parent=5 // pred_check
        _
      $region10: #{tpu_custom_call.1} parent=5 // pred_check_branch
        %208 = sbr.rel (%p205) target = $region12
      $region11: #{tpu_custom_call.1} parent=5 // pred_region
        %s209 = ssub.s32 %s17, 1
        // Predicated region
        $region13: #{tpu_custom_call.1} parent=11 // pred_check
          %p210 = pneg %p64
        $region14: #{tpu_custom_call.1} parent=11 // pred_check_branch
          %212 = sbr.rel (%p210) target = $region16
        $region15: #{tpu_custom_call.1} parent=11 // pred_region
          _
        $region16: #{tpu_custom_call.1} parent=11 // pred_fallthru
          _
        // Predicated region
        $region17: #{tpu_custom_call.1} parent=11 // pred_check
          %p213 = pneg %p85
        $region18: #{tpu_custom_call.1} parent=11 // pred_check_branch
          %215 = sbr.rel (%p213) target = $region20
        $region19: #{tpu_custom_call.1} parent=11 // pred_region
          _
        $region20: #{tpu_custom_call.1} parent=11 // pred_fallthru
          _
        // Predicated region
        $region21: #{tpu_custom_call.1} parent=11 // pred_check
          %p216 = pneg %p106
        $region22: #{tpu_custom_call.1} parent=11 // pred_check_branch
          %218 = sbr.rel (%p216) target = $region24
        $region23: #{tpu_custom_call.1} parent=11 // pred_region
          %s220 = ssub.s32 2048, 2048
          %221 = vsyncadd [#allocation5], %s220
          %s222 = sshll.u32 [#allocation4], 4
          %s223 = int_to_ptr.vmem [resolvable:$true] %s222
          %228 = dma.hbm_to_vmem [thread:$0]  %s3, 2048, %s223, [#allocation5], 128, 128, 8
        $region24: #{tpu_custom_call.1} parent=11 // pred_fallthru
          _
        // Predicated region
        $region25: #{tpu_custom_call.1} parent=11 // pred_check
          %p229 = pneg %p127
        $region26: #{tpu_custom_call.1} parent=11 // pred_check_branch
          %231 = sbr.rel (%p229) target = $region28
        $region27: #{tpu_custom_call.1} parent=11 // pred_region
          _
        $region28: #{tpu_custom_call.1} parent=11 // pred_fallthru
          _
        // Predicated region
        $region29: #{tpu_custom_call.1} parent=11 // pred_check
          %p232 = pneg %p148
        $region30: #{tpu_custom_call.1} parent=11 // pred_check_branch
          %234 = sbr.rel (%p232) target = $region32
        $region31: #{tpu_custom_call.1} parent=11 // pred_region
          _
        $region32: #{tpu_custom_call.1} parent=11 // pred_fallthru
          _
        // Predicated region
        $region33: #{tpu_custom_call.1} parent=11 // pred_check
          %p235 = pneg %p169
        $region34: #{tpu_custom_call.1} parent=11 // pred_check_branch
          %237 = sbr.rel (%p235) target = $region36
        $region35: #{tpu_custom_call.1} parent=11 // pred_region
          _
        $region36: #{tpu_custom_call.1} parent=11 // pred_fallthru
          _
      $region12: #{tpu_custom_call.1} parent=5 // pred_fallthru
        _
      %p238 = scmp.lt.s32.totalorder %s17, 2
      // Predicated region
      $region37: #{tpu_custom_call.1} parent=5 // pred_check
        %p239 = pneg %p238
      $region38: #{tpu_custom_call.1} parent=5 // pred_check_branch
        %241 = sbr.rel (%p239) target = $region40
      $region39: #{tpu_custom_call.1} parent=5 // pred_region
        // Predicated region
        $region41: #{tpu_custom_call.1} parent=39 // pred_check
          %p242 = pneg %p37
        $region42: #{tpu_custom_call.1} parent=39 // pred_check_branch
          %244 = sbr.rel (%p242) target = $region44
        $region43: #{tpu_custom_call.1} parent=39 // pred_region
          %s245 = sand.u32 %s27, 1
          %s246 = scalar_lea.sflag [#allocation3], %s245
          %s247 = sand.u32 %s27, 1
          %s248 = smul.addr %s247, 8
          %s249 = scalar_lea.vmem [#allocation2], %s248
          %s251 = ssub.s32 128, 128
          %252 = vsyncadd %s246, %s251
          %s253 = smul.addr %s17, 128
          %s254 = scalar_lea.hbm %s0, %s253
          %s256 = sshll.u32 %s249, 4
          %s257 = int_to_ptr.vmem [resolvable:$true] %s256
          %259 = dma.hbm_to_vmem [thread:$0]  %s254, 128, %s257, %s246
        $region44: #{tpu_custom_call.1} parent=39 // pred_fallthru
          _
      $region40: #{tpu_custom_call.1} parent=5 // pred_fallthru
        _
      %p260 = scmp.le.s32.totalorder 1, %s17
      %p261 = scmp.lt.s32.totalorder %s17, 3
      %p262 = pnand %p260, %p261
      %p263 = pneg %p262
      // Predicated region
      $region45: #{tpu_custom_call.1} parent=5 // pred_check
        _
      $region46: #{tpu_custom_call.1} parent=5 // pred_check_branch
        %265 = sbr.rel (%p262) target = $region48
      $region47: #{tpu_custom_call.1} parent=5 // pred_region
        %s266 = ssub.s32 %s17, 1
        %s267 = sand.u32 %s30, 1
        %s268 = scalar_lea.sflag [#allocation3], %s267
        %s269 = sand.u32 %s30, 1
        %s270 = smul.addr %s269, 8
        %s271 = scalar_lea.vmem [#allocation2], %s270
        // Predicated region
        $region49: #{tpu_custom_call.1} parent=47 // pred_check
          %p272 = pneg %p43
        $region50: #{tpu_custom_call.1} parent=47 // pred_check_branch
          %274 = sbr.rel (%p272) target = $region52
        $region51: #{tpu_custom_call.1} parent=47 // pred_region
          %275 = dma.done %s268, 128
        $region52: #{tpu_custom_call.1} parent=47 // pred_fallthru
          _
        // Predicated region
        $region53: #{tpu_custom_call.1} parent=47 // pred_check
          %p276 = pneg %p106
        $region54: #{tpu_custom_call.1} parent=47 // pred_check_branch
          %278 = sbr.rel (%p276) target = $region56
        $region55: #{tpu_custom_call.1} parent=47 // pred_region
          %279 = dma.done [#allocation5], 2048
        $region56: #{tpu_custom_call.1} parent=47 // pred_fallthru
          _
        %s280 = sand.u32 %s30, 1
        %s281 = scalar_lea.sflag [#allocation3], %s280
        %s282 = sand.u32 %s30, 1
        %s283 = smul.addr %s282, 8
        %s284 = scalar_lea.vmem [#allocation2], %s283
        %p285 = pneg %p43
        %p286 = pneg %p40
        %p287 = pneg %p64
        %p288 = pneg %p61
        %p289 = pneg %p85
        %p290 = pneg %p82
        %p291 = pneg %p106
        %p292 = pneg %p103
        %p293 = pneg %p127
        %p294 = pneg %p124
        %p295 = pneg %p148
        %p296 = pneg %p145
        %p297 = pneg %p169
        %p298 = pneg %p166
        %p299 = pneg %p195
        %p300 = pneg %p192
        %p301 = scmp.lt.s32.totalorder %s22, 1
        %s302 = scalar_select %p301, %s22, 1
        %s303 = smul.addr %s302, 8
        %s304 = scalar_lea.vmem %s7, %s303
        %p305 = scmp.lt.s32.totalorder %s22, 1
        %s306 = scalar_select %p305, %s22, 1
        %s307 = smul.addr %s306, 8
        %s308 = scalar_lea.vmem %s7, %s307
        %v309 = vld [vmem:[%s271] sm:$0xff]
        %v310 = vld [vmem:[%s1] sm:$0xff]
        %v311 = vld [vmem:[%s1 + $0x8] sm:$0xff]
        %v312 = vld [vmem:[%s1 + $0x10] sm:$0xff]
        %v313 = vld [vmem:[%s1 + $0x18] sm:$0xff]
        %v314 = vld [vmem:[%s1 + $0x20] sm:$0xff]
        %v315 = vld [vmem:[%s1 + $0x28] sm:$0xff]
        %v316 = vld [vmem:[%s1 + $0x30] sm:$0xff]
        %v317 = vld [vmem:[%s1 + $0x38] sm:$0xff]
        %v318 = vld [vmem:[%s1 + $0x40] sm:$0xff]
        %v319 = vld [vmem:[%s1 + $0x48] sm:$0xff]
        %v320 = vld [vmem:[%s1 + $0x50] sm:$0xff]
        %v321 = vld [vmem:[%s1 + $0x58] sm:$0xff]
        %v322 = vld [vmem:[%s1 + $0x60] sm:$0xff]
        %v323 = vld [vmem:[%s1 + $0x68] sm:$0xff]
        %v324 = vld [vmem:[%s1 + $0x70] sm:$0xff]
        %v325 = vld [vmem:[%s1 + $0x78] sm:$0xff]
        %v326 = vld [vmem:[%s2] sm:$0x1]
        %v328 = vlaneseq
        %v329 = vshrl.u32 %v328, 7
        %v330 = vsub.s32 0, %v329
        %v331 = vrot.slane %v326, %v330
        %333 = vmatprep.subr.mxu0 0.0
        %334 = vmatpush1.msra.mxu0 %v325
        %335 = vmatprep.subr.mxu0 0.0
        %336 = vmatpush1.msra.mxu0 %v324
        %337 = vmatprep.subr.mxu0 0.0
        %338 = vmatpush1.msra.mxu0 %v323
        %339 = vmatprep.subr.mxu0 0.0
        %340 = vmatpush1.msra.mxu0 %v322
        %341 = vmatprep.subr.mxu0 0.0
        %342 = vmatpush1.msra.mxu0 %v321
        %343 = vmatprep.subr.mxu0 0.0
        %344 = vmatpush1.msra.mxu0 %v320
        %345 = vmatprep.subr.mxu0 0.0
        %346 = vmatpush1.msra.mxu0 %v319
        %347 = vmatprep.subr.mxu0 0.0
        %348 = vmatpush1.msra.mxu0 %v318
        %349 = vmatprep.subr.mxu0 0.0
        %350 = vmatpush1.msra.mxu0 %v317
        %351 = vmatprep.subr.mxu0 0.0
        %352 = vmatpush1.msra.mxu0 %v316
        %353 = vmatprep.subr.mxu0 0.0
        %354 = vmatpush1.msra.mxu0 %v315
        %355 = vmatprep.subr.mxu0 0.0
        %356 = vmatpush1.msra.mxu0 %v314
        %357 = vmatprep.subr.mxu0 0.0
        %358 = vmatpush1.msra.mxu0 %v313
        %359 = vmatprep.subr.mxu0 0.0
        %360 = vmatpush1.msra.mxu0 %v312
        %361 = vmatprep.subr.mxu0 0.0
        %362 = vmatpush1.msra.mxu0 %v311
        %363 = vmatprep.subr.mxu0 0.0
        %364 = vmatpush1.msra.mxu0 %v310
        %365 = vmatprep.subr.mxu0 0.0
        %366 = vmatpush2.msra.mxu0 0.0
        %367 = vmatprep.subr.mxu0 0.0
        %368 = vmatpush2.msra.mxu0 0.0
        %369 = vmatprep.subr.mxu0 0.0
        %370 = vmatpush2.msra.mxu0 0.0
        %371 = vmatprep.subr.mxu0 0.0
        %372 = vmatpush2.msra.mxu0 0.0
        %373 = vmatprep.subr.mxu0 0.0
        %374 = vmatpush2.msra.mxu0 0.0
        %375 = vmatprep.subr.mxu0 0.0
        %376 = vmatpush2.msra.mxu0 0.0
        %377 = vmatprep.subr.mxu0 0.0
        %378 = vmatpush2.msra.mxu0 0.0
        %379 = vmatprep.subr.mxu0 0.0
        %380 = vmatpush2.msra.mxu0 0.0
        %381 = vmatprep.subr.mxu0 0.0
        %382 = vmatpush2.msra.mxu0 0.0
        %383 = vmatprep.subr.mxu0 0.0
        %384 = vmatpush2.msra.mxu0 0.0
        %385 = vmatprep.subr.mxu0 0.0
        %386 = vmatpush2.msra.mxu0 0.0
        %387 = vmatprep.subr.mxu0 0.0
        %388 = vmatpush2.msra.mxu0 0.0
        %389 = vmatprep.subr.mxu0 0.0
        %390 = vmatpush2.msra.mxu0 0.0
        %391 = vmatprep.subr.mxu0 0.0
        %392 = vmatpush2.msra.mxu0 0.0
        %393 = vmatprep.subr.mxu0 0.0
        %394 = vmatpush2.msra.mxu0 0.0
        %395 = vmatprep.subr.mxu0 0.0
        %396 = vmatpush2.msra.mxu0 0.0
        %397 = vmatprep.mubr.f32.mxu0 0.0
        %398 = vmatmul.mubr.f32.gmra.mxu0 %v309
        %v399 = vpop.f32.mrf.mxu0
        %v400 = vadd.f32 %v331, %v399
        %v401 = vpop.f32.mrf.mxu0
        %402 = vdwg.mxu0
        %v403 = vmax.f32 %v400, 0.0
        %v404 = vld [vmem:[#allocation4] sm:$0xff]
        %v405 = vld [vmem:[#allocation4 + $0x8] sm:$0xff]
        %v406 = vld [vmem:[#allocation4 + $0x10] sm:$0xff]
        %v407 = vld [vmem:[#allocation4 + $0x18] sm:$0xff]
        %v408 = vld [vmem:[#allocation4 + $0x20] sm:$0xff]
        %v409 = vld [vmem:[#allocation4 + $0x28] sm:$0xff]
        %v410 = vld [vmem:[#allocation4 + $0x30] sm:$0xff]
        %v411 = vld [vmem:[#allocation4 + $0x38] sm:$0xff]
        %v412 = vld [vmem:[#allocation4 + $0x40] sm:$0xff]
        %v413 = vld [vmem:[#allocation4 + $0x48] sm:$0xff]
        %v414 = vld [vmem:[#allocation4 + $0x50] sm:$0xff]
        %v415 = vld [vmem:[#allocation4 + $0x58] sm:$0xff]
        %v416 = vld [vmem:[#allocation4 + $0x60] sm:$0xff]
        %v417 = vld [vmem:[#allocation4 + $0x68] sm:$0xff]
        %v418 = vld [vmem:[#allocation4 + $0x70] sm:$0xff]
        %v419 = vld [vmem:[#allocation4 + $0x78] sm:$0xff]
        %v420 = vld [vmem:[%s4] sm:$0x1]
        %v422 = vlaneseq
        %v423 = vshrl.u32 %v422, 7
        %v424 = vsub.s32 0, %v423
        %v425 = vrot.slane %v420, %v424
        %427 = vmatprep.subr.mxu0 0.0
        %428 = vmatpush1.msra.mxu0 %v419
        %429 = vmatprep.subr.mxu0 0.0
        %430 = vmatpush1.msra.mxu0 %v418
        %431 = vmatprep.subr.mxu0 0.0
        %432 = vmatpush1.msra.mxu0 %v417
        %433 = vmatprep.subr.mxu0 0.0
        %434 = vmatpush1.msra.mxu0 %v416
        %435 = vmatprep.subr.mxu0 0.0
        %436 = vmatpush1.msra.mxu0 %v415
        %437 = vmatprep.subr.mxu0 0.0
        %438 = vmatpush1.msra.mxu0 %v414
        %439 = vmatprep.subr.mxu0 0.0
        %440 = vmatpush1.msra.mxu0 %v413
        %441 = vmatprep.subr.mxu0 0.0
        %442 = vmatpush1.msra.mxu0 %v412
        %443 = vmatprep.subr.mxu0 0.0
        %444 = vmatpush1.msra.mxu0 %v411
        %445 = vmatprep.subr.mxu0 0.0
        %446 = vmatpush1.msra.mxu0 %v410
        %447 = vmatprep.subr.mxu0 0.0
        %448 = vmatpush1.msra.mxu0 %v409
        %449 = vmatprep.subr.mxu0 0.0
        %450 = vmatpush1.msra.mxu0 %v408
        %451 = vmatprep.subr.mxu0 0.0
        %452 = vmatpush1.msra.mxu0 %v407
        %453 = vmatprep.subr.mxu0 0.0
        %454 = vmatpush1.msra.mxu0 %v406
        %455 = vmatprep.subr.mxu0 0.0
        %456 = vmatpush1.msra.mxu0 %v405
        %457 = vmatprep.subr.mxu0 0.0
        %458 = vmatpush1.msra.mxu0 %v404
        %459 = vmatprep.subr.mxu0 0.0
        %460 = vmatpush2.msra.mxu0 0.0
        %461 = vmatprep.subr.mxu0 0.0
        %462 = vmatpush2.msra.mxu0 0.0
        %463 = vmatprep.subr.mxu0 0.0
        %464 = vmatpush2.msra.mxu0 0.0
        %465 = vmatprep.subr.mxu0 0.0
        %466 = vmatpush2.msra.mxu0 0.0
        %467 = vmatprep.subr.mxu0 0.0
        %468 = vmatpush2.msra.mxu0 0.0
        %469 = vmatprep.subr.mxu0 0.0
        %470 = vmatpush2.msra.mxu0 0.0
        %471 = vmatprep.subr.mxu0 0.0
        %472 = vmatpush2.msra.mxu0 0.0
        %473 = vmatprep.subr.mxu0 0.0
        %474 = vmatpush2.msra.mxu0 0.0
        %475 = vmatprep.subr.mxu0 0.0
        %476 = vmatpush2.msra.mxu0 0.0
        %477 = vmatprep.subr.mxu0 0.0
        %478 = vmatpush2.msra.mxu0 0.0
        %479 = vmatprep.subr.mxu0 0.0
        %480 = vmatpush2.msra.mxu0 0.0
        %481 = vmatprep.subr.mxu0 0.0
        %482 = vmatpush2.msra.mxu0 0.0
        %483 = vmatprep.subr.mxu0 0.0
        %484 = vmatpush2.msra.mxu0 0.0
        %485 = vmatprep.subr.mxu0 0.0
        %486 = vmatpush2.msra.mxu0 0.0
        %487 = vmatprep.subr.mxu0 0.0
        %488 = vmatpush2.msra.mxu0 0.0
        %489 = vmatprep.subr.mxu0 0.0
        %490 = vmatpush2.msra.mxu0 0.0
        %491 = vmatprep.mubr.f32.mxu0 0.0
        %492 = vmatmul.mubr.f32.gmra.mxu0 %v403
        %v493 = vpop.f32.mrf.mxu0
        %v494 = vadd.f32 %v425, %v493
        %v495 = vpop.f32.mrf.mxu0
        %496 = vdwg.mxu0
        %v497 = vmax.f32 %v494, 0.0
        %v498 = vld [vmem:[%s5] sm:$0xff]
        %v499 = vld [vmem:[%s5 + $0x8] sm:$0xff]
        %v500 = vld [vmem:[%s5 + $0x10] sm:$0xff]
        %v501 = vld [vmem:[%s5 + $0x18] sm:$0xff]
        %v502 = vld [vmem:[%s5 + $0x20] sm:$0xff]
        %v503 = vld [vmem:[%s5 + $0x28] sm:$0xff]
        %v504 = vld [vmem:[%s5 + $0x30] sm:$0xff]
        %v505 = vld [vmem:[%s5 + $0x38] sm:$0xff]
        %v506 = vld [vmem:[%s5 + $0x40] sm:$0xff]
        %v507 = vld [vmem:[%s5 + $0x48] sm:$0xff]
        %v508 = vld [vmem:[%s5 + $0x50] sm:$0xff]
        %v509 = vld [vmem:[%s5 + $0x58] sm:$0xff]
        %v510 = vld [vmem:[%s5 + $0x60] sm:$0xff]
        %v511 = vld [vmem:[%s5 + $0x68] sm:$0xff]
        %v512 = vld [vmem:[%s5 + $0x70] sm:$0xff]
        %v513 = vld [vmem:[%s5 + $0x78] sm:$0xff]
        %v514 = vld [vmem:[%s6] sm:$0x1]
        %v516 = vlaneseq
        %v517 = vshrl.u32 %v516, 7
        %v518 = vsub.s32 0, %v517
        %v519 = vrot.slane %v514, %v518
        %521 = vmatprep.subr.mxu0 0.0
        %522 = vmatpush1.msra.mxu0 %v513
        %523 = vmatprep.subr.mxu0 0.0
        %524 = vmatpush1.msra.mxu0 %v512
        %525 = vmatprep.subr.mxu0 0.0
        %526 = vmatpush1.msra.mxu0 %v511
        %527 = vmatprep.subr.mxu0 0.0
        %528 = vmatpush1.msra.mxu0 %v510
        %529 = vmatprep.subr.mxu0 0.0
        %530 = vmatpush1.msra.mxu0 %v509
        %531 = vmatprep.subr.mxu0 0.0
        %532 = vmatpush1.msra.mxu0 %v508
        %533 = vmatprep.subr.mxu0 0.0
        %534 = vmatpush1.msra.mxu0 %v507
        %535 = vmatprep.subr.mxu0 0.0
        %536 = vmatpush1.msra.mxu0 %v506
        %537 = vmatprep.subr.mxu0 0.0
        %538 = vmatpush1.msra.mxu0 %v505
        %539 = vmatprep.subr.mxu0 0.0
        %540 = vmatpush1.msra.mxu0 %v504
        %541 = vmatprep.subr.mxu0 0.0
        %542 = vmatpush1.msra.mxu0 %v503
        %543 = vmatprep.subr.mxu0 0.0
        %544 = vmatpush1.msra.mxu0 %v502
        %545 = vmatprep.subr.mxu0 0.0
        %546 = vmatpush1.msra.mxu0 %v501
        %547 = vmatprep.subr.mxu0 0.0
        %548 = vmatpush1.msra.mxu0 %v500
        %549 = vmatprep.subr.mxu0 0.0
        %550 = vmatpush1.msra.mxu0 %v499
        %551 = vmatprep.subr.mxu0 0.0
        %552 = vmatpush1.msra.mxu0 %v498
        %553 = vmatprep.subr.mxu0 0.0
        %554 = vmatpush2.msra.mxu0 0.0
        %555 = vmatprep.subr.mxu0 0.0
        %556 = vmatpush2.msra.mxu0 0.0
        %557 = vmatprep.subr.mxu0 0.0
        %558 = vmatpush2.msra.mxu0 0.0
        %559 = vmatprep.subr.mxu0 0.0
        %560 = vmatpush2.msra.mxu0 0.0
        %561 = vmatprep.subr.mxu0 0.0
        %562 = vmatpush2.msra.mxu0 0.0
        %563 = vmatprep.subr.mxu0 0.0
        %564 = vmatpush2.msra.mxu0 0.0
        %565 = vmatprep.subr.mxu0 0.0
        %566 = vmatpush2.msra.mxu0 0.0
        %567 = vmatprep.subr.mxu0 0.0
        %568 = vmatpush2.msra.mxu0 0.0
        %569 = vmatprep.subr.mxu0 0.0
        %570 = vmatpush2.msra.mxu0 0.0
        %571 = vmatprep.subr.mxu0 0.0
        %572 = vmatpush2.msra.mxu0 0.0
        %573 = vmatprep.subr.mxu0 0.0
        %574 = vmatpush2.msra.mxu0 0.0
        %575 = vmatprep.subr.mxu0 0.0
        %576 = vmatpush2.msra.mxu0 0.0
        %577 = vmatprep.subr.mxu0 0.0
        %578 = vmatpush2.msra.mxu0 0.0
        %579 = vmatprep.subr.mxu0 0.0
        %580 = vmatpush2.msra.mxu0 0.0
        %581 = vmatprep.subr.mxu0 0.0
        %582 = vmatpush2.msra.mxu0 0.0
        %583 = vmatprep.subr.mxu0 0.0
        %584 = vmatpush2.msra.mxu0 0.0
        %585 = vmatprep.mubr.f32.mxu0 0.0
        %586 = vmatmul.mubr.f32.gmra.mxu0 %v497
        %v587 = vpop.f32.mrf.mxu0
        %v588 = vadd.f32 %v519, %v587
        %v589 = vpop.f32.mrf.mxu0
        %590 = vdwg.mxu0
        %vm591 = vcmask 31744
        %592 = vst.msk [vmem:[%s308] sm:$0xff] %vm591, %v588
        %p593 = scmp.lt.s32.totalorder %s22, 1
        %s594 = scalar_select %p593, %s22, 1
        %s595 = smul.addr %s594, 8
        %s596 = scalar_lea.vmem %s7, %s595
        // Predicated region
        $region57: #{tpu_custom_call.1} parent=47 // pred_check
          %p597 = pneg %p192
        $region58: #{tpu_custom_call.1} parent=47 // pred_check_branch
          %599 = sbr.rel (%p597) target = $region60
        $region59: #{tpu_custom_call.1} parent=47 // pred_region
          _
        $region60: #{tpu_custom_call.1} parent=47 // pred_fallthru
          _
      $region48: #{tpu_custom_call.1} parent=5 // pred_fallthru
        _
      %p600 = scmp.le.s32.totalorder 2, %s17
      // Predicated region
      $region61: #{tpu_custom_call.1} parent=5 // pred_check
        %p601 = pneg %p600
      $region62: #{tpu_custom_call.1} parent=5 // pred_check_branch
        %603 = sbr.rel (%p601) target = $region64
      $region63: #{tpu_custom_call.1} parent=5 // pred_region
        %s604 = ssub.s32 %s17, 2
        // Predicated region
        $region65: #{tpu_custom_call.1} parent=63 // pred_check
          %p605 = pneg %p198
        $region66: #{tpu_custom_call.1} parent=63 // pred_check_branch
          %607 = sbr.rel (%p605) target = $region68
        $region67: #{tpu_custom_call.1} parent=63 // pred_region
          %p608 = scmp.lt.s32.totalorder %s23, 1
          %s609 = scalar_select %p608, %s23, 1
          %s610 = smul.addr %s609, 8
          %s611 = scalar_lea.vmem %s7, %s610
        $region68: #{tpu_custom_call.1} parent=63 // pred_fallthru
          _
      $region64: #{tpu_custom_call.1} parent=5 // pred_fallthru
        _
    $region6: #{tpu_custom_call.1} parent=1 // loop_footer
      %s21 = sadd.s32 1, %s17
    $region7: #{tpu_custom_call.1} parent=1 // loop_footer_branch
      %16 = sbr.rel target = $region3
    $region8: #{tpu_custom_call.1} parent=1 // loop_exit
      _
    %612 = vsyncpa [#allocation3], 1
    %s613 = scalar_lea.sflag [#allocation3], 1
    %614 = vsyncpa %s613, 1
    %615 = vsyncpa [#allocation5], 1

</llo_original>
